<compile_context>
chip_gen: v6e
topology: v6e:2x2x1
jax: 0.10.0
libtpu: 0.0.40
codegen_flags: <defaults>
</compile_context>

<pallas_src>
import jax
import jax.numpy as jnp
from jax.experimental import pallas as pl
from jax.experimental.pallas import tpu as pltpu


def _h_sigmoid_kernel(x_ref, o_ref):
    x = x_ref[...]
    # relu6(x + 3) / 6  ==  clip(x + 3, 0, 6) / 6
    y = jnp.clip(x + 3.0, 0.0, 6.0) / 6.0
    o_ref[...] = y.astype(o_ref.dtype)


def h_sigmoid(x, *, target_block_bytes=2 * 1024 * 1024):
    """Elementwise hard-sigmoid. Accepts any shape (e.g. NCHW)."""
    orig_shape = x.shape
    orig_dtype = x.dtype
    n = x.size
    if n == 0:
        return x

    LANE = 128

    # Flatten; pad only up to the next multiple of 128 lanes (skipped entirely
    # when already aligned, which is the common case for NCHW activations).
    xf = jnp.reshape(x, (-1,))
    pad = (-n) % LANE
    if pad:
        xf = jnp.pad(xf, (0, pad))
    n_pad = n + pad

    # Pick the widest lane-dense slab width that divides the (padded) length
    # and still leaves >= 8 rows (to fill sublanes). Wide last dims give long
    # unmasked vector stores and large contiguous DMA descriptors.
    width = LANE
    for w in (8192, 4096, 2048, 1024, 512, 256):
        if n_pad % w == 0 and (n_pad // w) >= 8:
            width = w
            break
    rows = n_pad // width

    # Rows per block targeting ~2 MiB (fits 4x double-buffered copies well
    # inside the default scoped VMEM on v5e/v6e/v7x). Keep it a multiple of 8.
    itemsize = jnp.dtype(orig_dtype).itemsize
    tile_rows = max(8, (target_block_bytes // (width * itemsize)) // 8 * 8)
    # Keep at least 2 grid steps when the input is big enough so both v7x
    # TensorCores get work under dimension_semantics=("parallel",).
    if rows >= 16:
        tile_rows = min(tile_rows, max(8, (rows // 2) // 8 * 8))
    if tile_rows >= rows:
        tile_rows = rows  # single full-extent block (always a legal shape)

    x2d = jnp.reshape(xf, (rows, width))
    grid = (pl.cdiv(rows, tile_rows),)

    out2d = pl.pallas_call(
        _h_sigmoid_kernel,
        out_shape=jax.ShapeDtypeStruct((rows, width), orig_dtype),
        grid_spec=pltpu.PrefetchScalarGridSpec(
            num_scalar_prefetch=0,
            grid=grid,
            in_specs=[pl.BlockSpec((tile_rows, width), lambda i: (i, 0))],
            out_specs=pl.BlockSpec((tile_rows, width), lambda i: (i, 0)),
        ),
        compiler_params=pltpu.CompilerParams(
            dimension_semantics=("parallel",),
            vmem_limit_bytes=32 * 1024 * 1024,
        ),
    )(x2d)

    out = jnp.reshape(out2d, (-1,))
    if pad:
        out = out[:n]
    return jnp.reshape(out, orig_shape)


def h_sigmoid_ref(x):
    return jnp.clip(x + 3.0, 0.0, 6.0) / 6.0


if __name__ == "__main__":
    key = jax.random.PRNGKey(0)
    # NCHW, small shapes (matches the PyTorch module's usage on activations)
    x = jax.random.normal(key, (2, 4, 16, 16), dtype=jnp.float32) * 4.0

    y = h_sigmoid(x)
    y = jax.block_until_ready(y)

    y_ref = h_sigmoid_ref(x)
    assert y.shape == x.shape and y.dtype == x.dtype
    assert jnp.allclose(y, y_ref, atol=1e-6), "mismatch vs reference"

    # also exercise a non-128-aligned size to cover the padded path
    x2 = jax.random.normal(key, (3, 5, 7, 9), dtype=jnp.float32) * 4.0
    y2 = jax.block_until_ready(h_sigmoid(x2))
    assert jnp.allclose(y2, h_sigmoid_ref(x2), atol=1e-6), "mismatch (ragged)"

    print("KERNEL_OK")
</pallas_src>

<mosaic_0001>
module attributes {stable_mosaic.version = 11 : i64} {
  func.func @_h_sigmoid_kernel(%arg0: i32, %arg1: memref<8x256xf32, #tpu.memory_space<vmem>>, %arg2: memref<8x256xf32, #tpu.memory_space<vmem>>) attributes {dimension_semantics = [#tpu.dimension_semantics<parallel>], iteration_bounds = array<i64: 1>, scalar_prefetch = 0 : i64, scratch_operands = 0 : i64, tpu.core_type = #tpu.core_type<tc>, window_params = [{transform_indices = @transform_0, window_bounds = array<i64: 8, 256>}, {transform_indices = @transform_1, window_bounds = array<i64: 8, 256>}]} {
    %c0 = arith.constant 0 : index
    %c0_0 = arith.constant 0 : index
    %0 = vector.load %arg1[%c0, %c0_0] : memref<8x256xf32, #tpu.memory_space<vmem>>, vector<8x256xf32>
    %cst = arith.constant 3.000000e+00 : f32
    %1 = vector.broadcast %cst : f32 to vector<8x256xf32>
    %2 = arith.addf %0, %1 : vector<8x256xf32>
    %cst_1 = arith.constant 0.000000e+00 : f32
    %cst_2 = arith.constant 6.000000e+00 : f32
    %3 = vector.broadcast %cst_1 : f32 to vector<8x256xf32>
    %4 = arith.maximumf %3, %2 : vector<8x256xf32>
    %5 = vector.broadcast %cst_2 : f32 to vector<8x256xf32>
    %6 = arith.minimumf %5, %4 : vector<8x256xf32>
    %cst_3 = arith.constant 6.000000e+00 : f32
    %7 = vector.broadcast %cst_3 : f32 to vector<8x256xf32>
    %8 = arith.divf %6, %7 : vector<8x256xf32>
    %c0_4 = arith.constant 0 : index
    %c0_5 = arith.constant 0 : index
    %9 = vector.load %arg2[%c0_4, %c0_5] : memref<8x256xf32, #tpu.memory_space<vmem>>, vector<8x256xf32>
    tpu.vector_store %arg2[%c0_4, %c0_5], %8 {strides = array<i32>} : memref<8x256xf32, #tpu.memory_space<vmem>>, vector<8x256xf32>,
    return
  }
  func.func @transform_0(%arg0: i32) -> (i32, i32) {
    %c0_i32 = arith.constant 0 : i32
    %c0_i32_0 = arith.constant 0 : i32
    return %arg0, %c0_i32 : i32, i32
  }
  func.func @transform_1(%arg0: i32) -> (i32, i32) {
    %c0_i32 = arith.constant 0 : i32
    %c0_i32_0 = arith.constant 0 : i32
    return %arg0, %c0_i32 : i32, i32
  }
}

</mosaic_0001>

<llo_original>
// kernel: tpu_custom_call.1
$region0: #{tpu_custom_call.1}
  #allocation0 [shape = 'u32[]', space=smem, size = 0x4, offset = 0x4, fixed_abs, tag = 'smem constant byte address 0x4 - core index']
  #allocation1 [shape = 'u32[144,128]{1,0:T(1,128)}', space=vmem, size = 0x12000, scoped, tag = 'internal scratch']
  %s0 = inlined_call_operand.hbm [shape: f32[8,256], index: 0, kind: input, shape index: {}]
  %s1 = inlined_call_operand.hbm [shape: f32[8,256], index: 1, kind: output, shape index: {}]
  %s2 = sld [smem:[#allocation0]]
  $region18: #{tpu_custom_call.1} parent=0
    _
  %s4 = ssub.s32 1, %s2
  %s5 = scalar_select 0, %s4, %s2
  $region1: #{tpu_custom_call.1} parent=0
    #allocation2 [shape = 'u8[8192]{0}', space=vmem, size = 0x2000, scoped, tag = 'input window, operand 0, single buffered']
    #allocation3 [shape = 's32[1]{0}', space=sflag, size = 0x4, scoped, tag = 'scoped memory for tpu_custom_call.1']
    #allocation4 [shape = 's32[1]{0}', space=sflag, size = 0x4, scoped, tag = 'scoped memory for tpu_custom_call.1']
    #allocation5 [shape = 'u8[8192]{0}', space=vmem, size = 0x2000, scoped, tag = 'output window, operand 0, single buffered']
    %6 = vsyncpa [#allocation3], 0
    %7 = vsyncpa [#allocation4], 0
    // Predicated region
    $region2: #{tpu_custom_call.1} parent=1 // pred_check
      _
    $region3: #{tpu_custom_call.1} parent=1 // pred_check_branch
      %9 = sbr.rel (0) target = $region5
    $region4: #{tpu_custom_call.1} parent=1 // pred_region
      %s11 = ssub.s32 256, 256
      %12 = vsyncadd [#allocation3], %s11
      %s14 = sshll.u32 [#allocation2], 4
      %s15 = int_to_ptr.vmem [resolvable:$true] %s14
      %17 = dma.hbm_to_vmem [thread:$0]  %s0, 256, %s15, [#allocation3]
    $region5: #{tpu_custom_call.1} parent=1 // pred_fallthru
      _
    // Predicated region
    $region6: #{tpu_custom_call.1} parent=1 // pred_check
      _
    $region7: #{tpu_custom_call.1} parent=1 // pred_check_branch
      %19 = sbr.rel (0) target = $region9
    $region8: #{tpu_custom_call.1} parent=1 // pred_region
      %20 = dma.done [#allocation3], 256
    $region9: #{tpu_custom_call.1} parent=1 // pred_fallthru
      _
    %v21 = vld [vmem:[#allocation2] sm:$0xff]
    %v22 = vld [vmem:[#allocation2 + $0x8] sm:$0xff]
    %v23 = vadd.f32 %v21, 3.0
    %v24 = vadd.f32 %v22, 3.0
    %v25 = vmax.f32 %v23, 0.0
    %v26 = vmax.f32 %v24, 0.0
    %v27 = vmin.f32 %v25, 6.0
    %v28 = vmin.f32 %v26, 6.0
    %v29 = vrcp.pop 6.0
    %v30 = vmul.f32 %v27, %v29
    %v31 = vmul.f32 %v28, %v29
    %32 = vst [vmem:[#allocation5] sm:$0xff] %v30
    %33 = vst [vmem:[#allocation5 + $0x8] sm:$0xff] %v31
    // Predicated region
    $region10: #{tpu_custom_call.1} parent=1 // pred_check
      _
    $region11: #{tpu_custom_call.1} parent=1 // pred_check_branch
      %35 = sbr.rel (0) target = $region13
    $region12: #{tpu_custom_call.1} parent=1 // pred_region
      %s37 = ssub.s32 256, 256
      %38 = vsyncadd [#allocation4], %s37
      %s40 = sshll.u32 [#allocation5], 4
      %s41 = int_to_ptr.vmem [resolvable:$true] %s40
      %43 = dma.vmem_to_hbm [thread:$0]  %s41, 256, %s1, [#allocation4]
    $region13: #{tpu_custom_call.1} parent=1 // pred_fallthru
      _
    // Predicated region
    $region14: #{tpu_custom_call.1} parent=1 // pred_check
      _
    $region15: #{tpu_custom_call.1} parent=1 // pred_check_branch
      %45 = sbr.rel (0) target = $region17
    $region16: #{tpu_custom_call.1} parent=1 // pred_region
      %46 = dma.done [#allocation4], 256
    $region17: #{tpu_custom_call.1} parent=1 // pred_fallthru
      _
    %47 = vsyncpa [#allocation3], 1
    %48 = vsyncpa [#allocation4], 1

</llo_original>
